<compile_context>
chip_gen: v7x
topology: tpu7x:2x2x1
jax: 0.10.0
libtpu: 0.0.40
codegen_flags: <defaults>
</compile_context>

<pallas_src>
import functools

import jax
import jax.numpy as jnp
from jax import lax
from jax.experimental import pallas as pl
from jax.experimental.pallas import tpu as pltpu


_PAD_TARGET = jnp.iinfo(jnp.int32).min  # sentinel for padded batch columns


def _energy_margin_partials_kernel(logits_ref, targets_ref, params_ref,
                                   out_ref, acc_ref, *, has_pad):
    # grid = (num_cores, tiles_per_core); axis 1 is the batch reduction.
    i = pl.program_id(1)

    @pl.when(i == 0)
    def _init():
        acc_ref[...] = jnp.zeros_like(acc_ref)

    logits = logits_ref[...].astype(jnp.float32)          # (C, T) lane-dense
    tgt = targets_ref[...]                                 # (1, T) int32
    C, T = logits.shape

    # logistic_regression Linear(1,1) parameters + eta (SMEM scalars)
    w = params_ref[0]
    b = params_ref[1]
    eta = params_ref[2]

    known_f = (tgt >= 0).astype(jnp.float32)               # (1, T)
    unknown = tgt < 0
    if has_pad:
        # padded columns carry the sentinel target -> excluded from both sets
        unknown = jnp.logical_and(unknown, tgt != _PAD_TARGET)
    unknown_f = unknown.astype(jnp.float32)                # (1, T)

    # per-sample logsumexp over classes (sublane axis).  Padded columns are all
    # zeros (wrapper pads with 0) so everything stays finite; their
    # contributions are masked to zero by known_f / unknown_f.
    m = jnp.max(logits, axis=0, keepdims=True)             # (1, T)
    lse = m + jnp.log(jnp.sum(jnp.exp(logits - m), axis=0, keepdims=True))

    # sigmoid(logistic_regression(E)) terms
    sig_in = jax.nn.sigmoid(w * lse + b)                   # (1, T)
    sig_out = jax.nn.sigmoid(-(w * (lse - eta) + b))       # (1, T)

    # cross-entropy numerator: lse - logits[y]; select the true-class row.
    cls = lax.broadcasted_iota(jnp.int32, (C, T), 0)
    logit_true = jnp.sum(jnp.where(cls == tgt, logits, 0.0),
                         axis=0, keepdims=True)            # (1, T)
    ce_per = lse - logit_true

    # lane-dense partial-sum accumulation; rows 0..3 used, 4..7 stay zero.
    acc_ref[0:1, :] += sig_in * known_f
    acc_ref[1:2, :] += sig_out * unknown_f
    acc_ref[2:3, :] += ce_per * known_f
    acc_ref[3:4, :] += known_f

    @pl.when(i == pl.num_programs(1) - 1)
    def _finalize():
        sums = jnp.sum(acc_ref[...], axis=-1, keepdims=True)   # (8, 1)
        out_ref[...] = jnp.broadcast_to(sums[None], (1, 8, 128))


def _pick_tile_n(n_per_core, c, itemsize):
    # Target ~1 MiB of logits bytes per pipeline buffer (per-step grid overhead
    # amortized; measured scaling 29% -> 86% of roofline with growing blocks).
    budget = 1 * 1024 * 1024
    t = budget // max(1, c * itemsize)
    t = max(128, min(32768, (t // 128) * 128))
    t_needed = ((int(n_per_core) + 127) // 128) * 128      # don't exceed need
    return int(min(t, max(128, t_needed)))


def energy_margin_loss(
    logits,
    targets,
    lr_weight,
    lr_bias,
    *,
    full_train_loss=0.5,
    eta=1.0,
    false_alarm_cutoff=0.05,
    in_constraint_weight=1.0,
    ce_tol=2.0,
    ce_constraint_weight=1.0,
    out_constraint_weight=1.0,
    lam=0.0,
    lam2=0.0,
    tile_n=None,
    num_cores=2,
):
    N, C = logits.shape
    itemsize = jnp.dtype(logits.dtype).itemsize
    num_cores = max(1, int(num_cores))

    n_per_core = int(pl.cdiv(N, num_cores))
    if tile_n is None:
        tile_n = _pick_tile_n(n_per_core, C, itemsize)
    tile_n = int(max(128, ((int(tile_n) + 127) // 128) * 128))  # lane multiple
    tiles_per_core = int(pl.cdiv(N, num_cores * tile_n))
    n_pad = num_cores * tiles_per_core * tile_n

    # Lane-dense layout: classes on sublanes, batch on lanes.  Zero-pad the
    # batch so every block is fully in-bounds; padded targets get a sentinel.
    logits_t = jnp.zeros((C, n_pad), dtype=logits.dtype).at[:, :N].set(logits.T)
    targets_p = jnp.full((1, n_pad), _PAD_TARGET, dtype=jnp.int32)
    targets_p = targets_p.at[:, :N].set(targets.astype(jnp.int32)[None, :])
    params = jnp.array([lr_weight, lr_bias, eta], dtype=jnp.float32)

    # VMEM budget from the f32 working set: double-buffered inputs + ~4x f32
    # tile intermediates (cast logits, exp, iota select) + accumulator scratch.
    need = (2 * tile_n * C * itemsize        # double-buffered logits tiles
            + 2 * tile_n * 4                 # double-buffered target tiles
            + 4 * tile_n * C * 4             # f32 intermediates
            + 8 * tile_n * 4                 # accumulator scratch
            + 64 * 1024)
    vmem_limit = int(min(32 * 1024 * 1024,                    # v7x-safe cap
                         max(4 * 1024 * 1024, need + need // 2)))

    cost = pl.CostEstimate(
        flops=int(8 * n_pad * C + 64 * n_pad),
        transcendentals=int(n_pad * C + 4 * n_pad),           # exp dominates
        bytes_accessed=int(n_pad * C * itemsize + n_pad * 4
                           + num_cores * 8 * 128 * 4),
    )

    kernel = functools.partial(_energy_margin_partials_kernel,
                               has_pad=(n_pad != N))

    partials = pl.pallas_call(
        kernel,
        out_shape=jax.ShapeDtypeStruct((num_cores, 8, 128), jnp.float32),
        grid_spec=pltpu.PrefetchScalarGridSpec(
            num_scalar_prefetch=0,
            grid=(num_cores, tiles_per_core),
            in_specs=[
                pl.BlockSpec((C, tile_n),
                             lambda c, i: (0, c * tiles_per_core + i)),
                pl.BlockSpec((1, tile_n),
                             lambda c, i: (0, c * tiles_per_core + i)),
                pl.BlockSpec(memory_space=pltpu.MemorySpace.SMEM),
            ],
            out_specs=pl.BlockSpec((1, 8, 128), lambda c, i: (c, 0, 0)),
            scratch_shapes=[pltpu.VMEM((8, tile_n), jnp.float32)],
        ),
        compiler_params=pltpu.CompilerParams(
            dimension_semantics=("parallel", "arbitrary"),
            vmem_limit_bytes=vmem_limit,
        ),
        cost_estimate=cost,
    )(logits_t, targets_p, params)

    # --- tiny cross-core combine + ALM finalize in plain JAX (scalar work) ---
    totals = jnp.sum(partials[:, :4, 0], axis=0)
    sum_in, sum_out, sum_ce, n_known = totals[0], totals[1], totals[2], totals[3]
    n_unknown = float(N) - n_known
    # NOTE: no div-by-zero clamp — degenerate batches yield NaN like the
    # PyTorch reference (mean over an empty tensor).
    energy_loss_in = sum_in / n_known
    energy_loss_out = sum_out / n_unknown
    loss_ce = sum_ce / n_known

    in_term = energy_loss_in - false_alarm_cutoff
    loss_in = jnp.where(
        in_constraint_weight * in_term + lam >= 0.0,
        in_term * lam + in_constraint_weight * 0.5 * in_term * in_term,
        -(lam * lam) * 0.5 / in_constraint_weight,
    )
    ce_term = loss_ce - ce_tol * full_train_loss
    loss_ce_c = jnp.where(
        ce_constraint_weight * ce_term + lam2 >= 0.0,
        ce_term * lam2 + ce_constraint_weight * 0.5 * ce_term * ce_term,
        -(lam2 * lam2) * 0.5 / ce_constraint_weight,
    )
    return loss_ce_c + out_constraint_weight * energy_loss_out + loss_in


def _reference(logits, targets, w, b, **hp):
    # pure-JAX reference mirroring the PyTorch module
    logits = logits.astype(jnp.float32)
    known = targets >= 0
    lse = jax.scipy.special.logsumexp(logits, axis=1)
    sig_in = jax.nn.sigmoid(w * lse + b)
    sig_out = jax.nn.sigmoid(-(w * (lse - hp["eta"]) + b))
    e_in = jnp.sum(jnp.where(known, sig_in, 0.0)) / jnp.sum(known)
    e_out = jnp.sum(jnp.where(~known, sig_out, 0.0)) / jnp.sum(~known)
    logit_true = jnp.take_along_axis(
        logits, jnp.maximum(targets, 0)[:, None], axis=1)[:, 0]
    ce = jnp.sum(jnp.where(known, lse - logit_true, 0.0)) / jnp.sum(known)

    it = e_in - hp["false_alarm_cutoff"]
    icw, lam = hp["in_constraint_weight"], hp["lam"]
    loss_in = jnp.where(icw * it + lam >= 0, it * lam + icw / 2 * it ** 2,
                        -(lam ** 2) * 0.5 / icw)
    ct = ce - hp["ce_tol"] * hp["full_train_loss"]
    ccw, lam2 = hp["ce_constraint_weight"], hp["lam2"]
    loss_ce = jnp.where(ccw * ct + lam2 >= 0, ct * lam2 + ccw / 2 * ct ** 2,
                        -(lam2 ** 2) * 0.5 / ccw)
    return loss_ce + hp["out_constraint_weight"] * e_out + loss_in


if __name__ == "__main__":
    key = jax.random.PRNGKey(0)
    k1, k2, k3 = jax.random.split(key, 3)

    hp = dict(
        full_train_loss=0.5,
        eta=1.0,
        false_alarm_cutoff=0.05,
        in_constraint_weight=1.0,
        ce_tol=2.0,
        ce_constraint_weight=1.0,
        out_constraint_weight=1.0,
        lam=0.0,
        lam2=0.0,
    )

    # deterministic init of the logistic_regression Linear(1, 1) parameters
    lr_w = float(jax.random.normal(k3, ()) * 0.5)
    lr_b = -0.25

    # Case 1: N=20, C=16 — exercises the zero-padded / sentinel-masked region
    # and the 2-"core" grid (serial on v5e/v6e, split across TCs on v7x).
    N, C = 20, 16
    n_known = 12
    logits = jax.random.normal(k1, (N, C), dtype=jnp.float32)
    labels = jax.random.randint(k2, (n_known,), 0, C, dtype=jnp.int32)
    targets = jnp.concatenate(
        [labels, -jnp.ones((N - n_known,), dtype=jnp.int32)])

    loss = jax.block_until_ready(
        energy_margin_loss(logits, targets, lr_w, lr_b, **hp))
    ref = _reference(logits, targets, lr_w, lr_b, **hp)
    assert jnp.isfinite(loss), loss
    assert jnp.allclose(loss, ref, rtol=1e-5, atol=1e-5), (loss, ref)

    # Case 2: N=300 with tile_n=128 — multi-tile accumulation per core plus a
    # padded final tile.
    k4, k5 = jax.random.split(k3)
    N2 = 300
    logits2 = jax.random.normal(k4, (N2, C), dtype=jnp.float32)
    known2 = jax.random.bernoulli(k5, 0.7, (N2,))
    labels2 = jax.random.randint(k2, (N2,), 0, C, dtype=jnp.int32)
    targets2 = jnp.where(known2, labels2, -1)

    loss2 = jax.block_until_ready(
        energy_margin_loss(logits2, targets2, lr_w, lr_b, tile_n=128, **hp))
    ref2 = _reference(logits2, targets2, lr_w, lr_b, **hp)
    assert jnp.isfinite(loss2), loss2
    assert jnp.allclose(loss2, ref2, rtol=1e-4, atol=1e-4), (loss2, ref2)

    print("KERNEL_OK")
</pallas_src>

<mosaic_0001>
module attributes {stable_mosaic.version = 11 : i64} {
  func.func @_energy_margin_partials_kernel(%arg0: i32, %arg1: i32, %arg2: memref<16x128xf32, #tpu.memory_space<vmem>>, %arg3: memref<1x128xi32, #tpu.memory_space<vmem>>, %arg4: memref<3xf32, #tpu.memory_space<smem>>, %arg5: memref<1x8x128xf32, #tpu.memory_space<vmem>>, %arg6: memref<8x128xf32, #tpu.memory_space<vmem>>) attributes {dimension_semantics = [#tpu.dimension_semantics<parallel>, #tpu.dimension_semantics<arbitrary>], iteration_bounds = array<i64: 2, 1>, scalar_prefetch = 0 : i64, scratch_operands = 1 : i64, tpu.core_type = #tpu.core_type<tc>, window_params = [{transform_indices = @transform_0, window_bounds = array<i64: 16, 128>}, {transform_indices = @transform_1, window_bounds = array<i64: 1, 128>}, {transform_indices = @transform_2, window_bounds = array<i64: 3>}, {transform_indices = @transform_3, window_bounds = array<i64: 1, 8, 128>}]} {
    %c0_i32 = arith.constant 0 : i32
    %0 = arith.cmpi eq, %arg1, %c0_i32 : i32
    %1 = arith.extui %0 : i1 to i32
    %c0_i32_0 = arith.constant 0 : i32
    %2 = arith.cmpi ne, %1, %c0_i32_0 : i32
    scf.if %2 {
      %cst_30 = arith.constant 0.000000e+00 : f32
      %76 = vector.broadcast %cst_30 : f32 to vector<8x128xf32>
      %c0_31 = arith.constant 0 : index
      %c0_32 = arith.constant 0 : index
      %77 = vector.load %arg6[%c0_31, %c0_32] : memref<8x128xf32, #tpu.memory_space<vmem>>, vector<8x128xf32>
      tpu.vector_store %arg6[%c0_31, %c0_32], %76 {strides = array<i32>} : memref<8x128xf32, #tpu.memory_space<vmem>>, vector<8x128xf32>,
    } else {
    }
    %c0 = arith.constant 0 : index
    %c0_1 = arith.constant 0 : index
    %3 = vector.load %arg2[%c0, %c0_1] : memref<16x128xf32, #tpu.memory_space<vmem>>, vector<16x128xf32>
    %c0_2 = arith.constant 0 : index
    %c0_3 = arith.constant 0 : index
    %4 = vector.load %arg3[%c0_2, %c0_3] : memref<1x128xi32, #tpu.memory_space<vmem>>, vector<1x128xi32>
    %c0_4 = arith.constant 0 : index
    %5 = memref.load %arg4[%c0_4] : memref<3xf32, #tpu.memory_space<smem>>
    %c1 = arith.constant 1 : index
    %6 = memref.load %arg4[%c1] : memref<3xf32, #tpu.memory_space<smem>>
    %c2 = arith.constant 2 : index
    %7 = memref.load %arg4[%c2] : memref<3xf32, #tpu.memory_space<smem>>
    %c0_i32_5 = arith.constant 0 : i32
    %8 = vector.broadcast %c0_i32_5 : i32 to vector<1x128xi32>
    %9 = arith.cmpi sge, %4, %8 : vector<1x128xi32>
    %10 = arith.extui %9 : vector<1x128xi1> to vector<1x128xi32>
    %11 = arith.sitofp %10 : vector<1x128xi32> to vector<1x128xf32>
    %c0_i32_6 = arith.constant 0 : i32
    %12 = vector.broadcast %c0_i32_6 : i32 to vector<1x128xi32>
    %13 = arith.cmpi slt, %4, %12 : vector<1x128xi32>
    %c-2147483648_i32 = arith.constant -2147483648 : i32
    %14 = vector.broadcast %c-2147483648_i32 : i32 to vector<1x128xi32>
    %15 = arith.cmpi ne, %4, %14 : vector<1x128xi32>
    %16 = arith.andi %13, %15 : vector<1x128xi1>
    %17 = arith.extui %16 : vector<1x128xi1> to vector<1x128xi32>
    %18 = arith.sitofp %17 : vector<1x128xi32> to vector<1x128xf32>
    %cst = arith.constant dense<0xFF800000> : vector<128xf32>
    %19 = vector.multi_reduction <maximumf>, %3, %cst [0] : vector<16x128xf32> to vector<128xf32>
    %20 = vector.shape_cast %19 : vector<128xf32> to vector<1x128xf32>
    %21 = vector.broadcast %20 : vector<1x128xf32> to vector<16x128xf32>
    %22 = arith.subf %3, %21 : vector<16x128xf32>
    %23 = math.exp %22 : vector<16x128xf32>
    %cst_7 = arith.constant dense<0.000000e+00> : vector<128xf32>
    %24 = vector.multi_reduction <add>, %23, %cst_7 [0] : vector<16x128xf32> to vector<128xf32>
    %25 = vector.shape_cast %24 : vector<128xf32> to vector<1x128xf32>
    %26 = math.log %25 : vector<1x128xf32>
    %27 = arith.addf %20, %26 : vector<1x128xf32>
    %28 = vector.broadcast %5 : f32 to vector<1x128xf32>
    %29 = arith.mulf %28, %27 : vector<1x128xf32>
    %30 = vector.broadcast %6 : f32 to vector<1x128xf32>
    %31 = arith.addf %29, %30 : vector<1x128xf32>
    %32 = arith.negf %31 : vector<1x128xf32>
    %33 = math.exp %32 : vector<1x128xf32>
    %cst_8 = arith.constant 1.000000e+00 : f32
    %34 = vector.broadcast %cst_8 : f32 to vector<1x128xf32>
    %35 = arith.addf %34, %33 : vector<1x128xf32>
    %36 = arith.divf %34, %35 : vector<1x128xf32>
    %37 = vector.broadcast %7 : f32 to vector<1x128xf32>
    %38 = arith.subf %27, %37 : vector<1x128xf32>
    %39 = vector.broadcast %5 : f32 to vector<1x128xf32>
    %40 = arith.mulf %39, %38 : vector<1x128xf32>
    %41 = vector.broadcast %6 : f32 to vector<1x128xf32>
    %42 = arith.addf %40, %41 : vector<1x128xf32>
    %cst_9 = arith.constant 0.000000e+00 : f32
    %43 = vector.broadcast %cst_9 : f32 to vector<1x128xf32>
    %44 = arith.subf %43, %42 : vector<1x128xf32>
    %45 = arith.negf %44 : vector<1x128xf32>
    %46 = math.exp %45 : vector<1x128xf32>
    %cst_10 = arith.constant 1.000000e+00 : f32
    %47 = vector.broadcast %cst_10 : f32 to vector<1x128xf32>
    %48 = arith.addf %47, %46 : vector<1x128xf32>
    %49 = arith.divf %47, %48 : vector<1x128xf32>
    %50 = tpu.iota {dimensions = array<i32: 0>} : vector<16x128xi32>
    %51 = vector.broadcast %4 : vector<1x128xi32> to vector<16x128xi32>
    %52 = arith.cmpi eq, %50, %51 : vector<16x128xi32>
    %cst_11 = arith.constant 0.000000e+00 : f32
    %53 = vector.broadcast %cst_11 : f32 to vector<16x128xf32>
    %54 = arith.select %52, %3, %53 : vector<16x128xi1>, vector<16x128xf32>
    %cst_12 = arith.constant dense<0.000000e+00> : vector<128xf32>
    %55 = vector.multi_reduction <add>, %54, %cst_12 [0] : vector<16x128xf32> to vector<128xf32>
    %56 = vector.shape_cast %55 : vector<128xf32> to vector<1x128xf32>
    %57 = arith.subf %27, %56 : vector<1x128xf32>
    %c0_13 = arith.constant 0 : index
    %c0_14 = arith.constant 0 : index
    %58 = vector.load %arg6[%c0_13, %c0_14] : memref<8x128xf32, #tpu.memory_space<vmem>>, vector<1x128xf32>
    %59 = arith.mulf %36, %11 : vector<1x128xf32>
    %60 = arith.addf %58, %59 : vector<1x128xf32>
    %c0_15 = arith.constant 0 : index
    %c0_16 = arith.constant 0 : index
    %61 = vector.load %arg6[%c0_15, %c0_16] : memref<8x128xf32, #tpu.memory_space<vmem>>, vector<1x128xf32>
    tpu.vector_store %arg6[%c0_15, %c0_16], %60 {strides = array<i32>} : memref<8x128xf32, #tpu.memory_space<vmem>>, vector<1x128xf32>,
    %c1_17 = arith.constant 1 : index
    %c0_18 = arith.constant 0 : index
    %62 = vector.load %arg6[%c1_17, %c0_18] : memref<8x128xf32, #tpu.memory_space<vmem>>, vector<1x128xf32>
    %63 = arith.mulf %49, %18 : vector<1x128xf32>
    %64 = arith.addf %62, %63 : vector<1x128xf32>
    %c1_19 = arith.constant 1 : index
    %c0_20 = arith.constant 0 : index
    %65 = vector.load %arg6[%c1_19, %c0_20] : memref<8x128xf32, #tpu.memory_space<vmem>>, vector<1x128xf32>
    tpu.vector_store %arg6[%c1_19, %c0_20], %64 {strides = array<i32>} : memref<8x128xf32, #tpu.memory_space<vmem>>, vector<1x128xf32>,
    %c2_21 = arith.constant 2 : index
    %c0_22 = arith.constant 0 : index
    %66 = vector.load %arg6[%c2_21, %c0_22] : memref<8x128xf32, #tpu.memory_space<vmem>>, vector<1x128xf32>
    %67 = arith.mulf %57, %11 : vector<1x128xf32>
    %68 = arith.addf %66, %67 : vector<1x128xf32>
    %c2_23 = arith.constant 2 : index
    %c0_24 = arith.constant 0 : index
    %69 = vector.load %arg6[%c2_23, %c0_24] : memref<8x128xf32, #tpu.memory_space<vmem>>, vector<1x128xf32>
    tpu.vector_store %arg6[%c2_23, %c0_24], %68 {strides = array<i32>} : memref<8x128xf32, #tpu.memory_space<vmem>>, vector<1x128xf32>,
    %c3 = arith.constant 3 : index
    %c0_25 = arith.constant 0 : index
    %70 = vector.load %arg6[%c3, %c0_25] : memref<8x128xf32, #tpu.memory_space<vmem>>, vector<1x128xf32>
    %71 = arith.addf %70, %11 : vector<1x128xf32>
    %c3_26 = arith.constant 3 : index
    %c0_27 = arith.constant 0 : index
    %72 = vector.load %arg6[%c3_26, %c0_27] : memref<8x128xf32, #tpu.memory_space<vmem>>, vector<1x128xf32>
    tpu.vector_store %arg6[%c3_26, %c0_27], %71 {strides = array<i32>} : memref<8x128xf32, #tpu.memory_space<vmem>>, vector<1x128xf32>,
    %c0_i32_28 = arith.constant 0 : i32
    %73 = arith.cmpi eq, %arg1, %c0_i32_28 : i32
    %74 = arith.extui %73 : i1 to i32
    %c0_i32_29 = arith.constant 0 : i32
    %75 = arith.cmpi ne, %74, %c0_i32_29 : i32
    scf.if %75 {
      %c0_30 = arith.constant 0 : index
      %c0_31 = arith.constant 0 : index
      %76 = vector.load %arg6[%c0_30, %c0_31] : memref<8x128xf32, #tpu.memory_space<vmem>>, vector<8x128xf32>
      %cst_32 = arith.constant dense<0.000000e+00> : vector<8xf32>
      %77 = vector.multi_reduction <add>, %76, %cst_32 [1] : vector<8x128xf32> to vector<8xf32>
      %78 = vector.shape_cast %77 : vector<8xf32> to vector<8x1xf32>
      %79 = vector.shape_cast %78 : vector<8x1xf32> to vector<1x8x1xf32>
      %80 = vector.shape_cast %79 : vector<1x8x1xf32> to vector<1x8x1xf32>
      %81 = vector.broadcast %80 : vector<1x8x1xf32> to vector<1x8x128xf32>
      %c0_33 = arith.constant 0 : index
      %c0_34 = arith.constant 0 : index
      %c0_35 = arith.constant 0 : index
      %82 = vector.load %arg5[%c0_33, %c0_34, %c0_35] : memref<1x8x128xf32, #tpu.memory_space<vmem>>, vector<1x8x128xf32>
      tpu.vector_store %arg5[%c0_33, %c0_34, %c0_35], %81 {strides = array<i32>} : memref<1x8x128xf32, #tpu.memory_space<vmem>>, vector<1x8x128xf32>,
    } else {
    }
    return
  }
  func.func @transform_0(%arg0: i32, %arg1: i32) -> (i32, i32) {
    %c1_i32 = arith.constant 1 : i32
    %0 = arith.muli %arg0, %c1_i32 : i32
    %1 = arith.addi %0, %arg1 : i32
    %c0_i32 = arith.constant 0 : i32
    %c0_i32_0 = arith.constant 0 : i32
    return %c0_i32, %1 : i32, i32
  }
  func.func @transform_1(%arg0: i32, %arg1: i32) -> (i32, i32) {
    %c1_i32 = arith.constant 1 : i32
    %0 = arith.muli %arg0, %c1_i32 : i32
    %1 = arith.addi %0, %arg1 : i32
    %c0_i32 = arith.constant 0 : i32
    %c0_i32_0 = arith.constant 0 : i32
    return %c0_i32, %1 : i32, i32
  }
  func.func @transform_2(%arg0: i32, %arg1: i32) -> i32 {
    %c0_i32 = arith.constant 0 : i32
    %c0_i32_0 = arith.constant 0 : i32
    return %c0_i32 : i32
  }
  func.func @transform_3(%arg0: i32, %arg1: i32) -> (i32, i32, i32) {
    %c0_i32 = arith.constant 0 : i32
    %c0_i32_0 = arith.constant 0 : i32
    %c0_i32_1 = arith.constant 0 : i32
    return %arg0, %c0_i32, %c0_i32_0 : i32, i32, i32
  }
}

</mosaic_0001>

<llo_original>
// kernel: tpu_custom_call.1
$region0: #{tpu_custom_call.1}
  #allocation0 [shape = 'u32[]', space=smem, size = 0x4, offset = 0x4, fixed_abs, tag = 'smem constant byte address 0x4 - core index']
  #allocation1 [shape = 'u32[144,128]{1,0:T(1,128)}', space=vmem, size = 0x12000, scoped, tag = 'internal scratch']
  #allocation2 [shape = 'f32[8,128]{1,0:T(8,128)}', space=vmem, size = 0x1000, scoped, tag = 'scratch operand']
  %s0 = inlined_call_operand.hbm [shape: f32[16,256], index: 0, kind: input, shape index: {}]
  %s1 = inlined_call_operand.vmem [shape: s32[1,256], index: 1, kind: input, shape index: {}]
  %s2 = inlined_call_operand.vmem [shape: f32[3], index: 2, kind: input, shape index: {}]
  %s3 = inlined_call_operand.hbm [shape: f32[2,8,128], index: 3, kind: output, shape index: {}]
  %s4 = sld [smem:[#allocation0]]
  $region61: #{tpu_custom_call.1} parent=0
    _
  %s6 = ssub.s32 1, %s4
  %s7 = scalar_select 0, %s6, %s4
  $region1: #{tpu_custom_call.1} parent=0
    #allocation3 [shape = 'u8[16384]{0}', space=vmem, size = 0x4000, scoped, tag = 'input window, operand 0']
    #allocation4 [shape = 's32[2]{0}', space=sflag, size = 0x8, scoped, tag = 'scoped memory for tpu_custom_call.1']
    #allocation5 [shape = 's32[2]{0}', space=sflag, size = 0x8, scoped, tag = 'scoped memory for tpu_custom_call.1']
    #allocation6 [shape = 's32[2]{0}', space=sflag, size = 0x8, scoped, tag = 'scoped memory for tpu_custom_call.1']
    #allocation7 [shape = 'u8[512]{0}', space=smem, size = 0x200, scoped, tag = 'input window, operand 2, single buffered']
    #allocation8 [shape = 'u8[8192]{0}', space=vmem, size = 0x2000, scoped, tag = 'output window, operand 0']
    %8 = vsyncpa [#allocation4], 0
    %s9 = scalar_lea.sflag [#allocation4], 1
    %10 = vsyncpa %s9, 0
    %11 = vsyncpa [#allocation6], 0
    %12 = vsyncpa [#allocation5], 0
    %s13 = scalar_lea.sflag [#allocation5], 1
    %14 = vsyncpa %s13, 0
    loop: start=0, step=1, limit=4
    $region2: #{tpu_custom_call.1} parent=1 // loop_pre_header
      _
    $region3: #{tpu_custom_call.1} parent=1 // loop_header
      %s16 = sphi 0, %s20
      %p17 = scmp.ge.s32.totalorder %s16, 4
      %s23 = sphi 0, %s35
      %s24 = sphi 0, %s31
      %s25 = sphi 0, %s23
      %s26 = sphi 0, %s24
      %s27 = sphi 0, %s25
      %s28 = sphi 0, %s26
      %s40 = sphi 0, %s42
      %s43 = sphi 0, %s40
      %s44 = sphi 0, %s43
      %s60 = sphi 0, %s44
      %s68 = sphi 0, %s70
      %s71 = sphi 0, %s68
      %s72 = sphi 0, %s71
      %s88 = sphi 0, %s72
      %s92 = sphi 0, %s92
      %s94 = sphi 0, %s92
      %s95 = sphi 0, %s94
      %s109 = sphi 0, %s95
      %s115 = sphi 0, %s117
      %s118 = sphi 0, %s115
      %s119 = sphi 0, %s118
      %s135 = sphi 0, %s119
    $region4: #{tpu_custom_call.1} parent=1 // loop_header_branch
      %19 = sbr.rel (%p17) target = $region8
    $region5: #{tpu_custom_call.1} parent=1 // loop_body
      %s21 = ssub.s32 %s16, 1
      %s22 = ssub.s32 %s16, 2
      %s29 = sadd.s32 1, %s24
      %p30 = scmp.ge.s32.totalorder %s29, 1
      %s31 = scalar_select %p30, 0, %s29
      %s32 = sadd.s32 1, %s23
      %s33 = scalar_select %p30, %s32, %s23
      %p34 = scmp.ge.s32.totalorder %s33, 2
      %s35 = scalar_select %p34, 0, %s33
      %s36 = sadd.s32 %s23, %s24
      %s37 = sadd.s32 %s35, %s31
      %s38 = ssub.s32 %s36, %s37
      %p39 = scmp.eq.s32.totalorder %s38, 0
      %s41 = sadd.s32 %s40, 1
      %s42 = scalar_select %p39, %s40, %s41
      %p45 = pneg %p39
      %p46 = scmp.eq.s32.totalorder %s16, 1
      %p47 = por %p45, %p46
      %p48 = scmp.ne.s32.totalorder %s40, %s43
      %p49 = scmp.eq.s32.totalorder %s16, 0
      %p50 = por %p48, %p49
      %p51 = scmp.ne.s32.totalorder %s40, %s43
      %p52 = scmp.eq.s32.totalorder %s21, 1
      %p53 = por %p51, %p52
      %p54 = scmp.ne.s32.totalorder %s43, %s44
      %p55 = scmp.eq.s32.totalorder %s21, 0
      %p56 = por %p54, %p55
      %p57 = scmp.ne.s32.totalorder %s43, %s44
      %p58 = scmp.eq.s32.totalorder %s22, 1
      %p59 = por %p57, %p58
      %p61 = scmp.ne.s32.totalorder %s44, %s60
      %p62 = scmp.eq.s32.totalorder %s22, 0
      %p63 = por %p61, %p62
      %s64 = sadd.s32 %s23, %s24
      %s65 = sadd.s32 %s35, %s31
      %s66 = ssub.s32 %s64, %s65
      %p67 = scmp.eq.s32.totalorder %s66, 0
      %s69 = sadd.s32 %s68, 1
      %s70 = scalar_select %p67, %s68, %s69
      %p73 = pneg %p67
      %p74 = scmp.eq.s32.totalorder %s16, 1
      %p75 = por %p73, %p74
      %p76 = scmp.ne.s32.totalorder %s68, %s71
      %p77 = scmp.eq.s32.totalorder %s16, 0
      %p78 = por %p76, %p77
      %p79 = scmp.ne.s32.totalorder %s68, %s71
      %p80 = scmp.eq.s32.totalorder %s21, 1
      %p81 = por %p79, %p80
      %p82 = scmp.ne.s32.totalorder %s71, %s72
      %p83 = scmp.eq.s32.totalorder %s21, 0
      %p84 = por %p82, %p83
      %p85 = scmp.ne.s32.totalorder %s71, %s72
      %p86 = scmp.eq.s32.totalorder %s22, 1
      %p87 = por %p85, %p86
      %p89 = scmp.ne.s32.totalorder %s72, %s88
      %p90 = scmp.eq.s32.totalorder %s22, 0
      %p91 = por %p89, %p90
      %s93 = sadd.s32 %s92, 1
      %p96 = scmp.eq.s32.totalorder %s16, 1
      %p97 = scmp.ne.s32.totalorder %s92, %s94
      %p98 = scmp.eq.s32.totalorder %s16, 0
      %p99 = por %p97, %p98
      %p100 = scmp.ne.s32.totalorder %s92, %s94
      %p101 = scmp.eq.s32.totalorder %s21, 1
      %p102 = por %p100, %p101
      %p103 = scmp.ne.s32.totalorder %s94, %s95
      %p104 = scmp.eq.s32.totalorder %s21, 0
      %p105 = por %p103, %p104
      %p106 = scmp.ne.s32.totalorder %s94, %s95
      %p107 = scmp.eq.s32.totalorder %s22, 1
      %p108 = por %p106, %p107
      %p110 = scmp.ne.s32.totalorder %s95, %s109
      %p111 = scmp.eq.s32.totalorder %s22, 0
      %p112 = por %p110, %p111
      %s113 = ssub.s32 %s23, %s35
      %p114 = scmp.eq.s32.totalorder %s113, 0
      %s116 = sadd.s32 %s115, 1
      %s117 = scalar_select %p114, %s115, %s116
      %p120 = pneg %p114
      %p121 = scmp.eq.s32.totalorder %s16, 1
      %p122 = por %p120, %p121
      %p123 = scmp.ne.s32.totalorder %s115, %s118
      %p124 = scmp.eq.s32.totalorder %s16, 0
      %p125 = por %p123, %p124
      %p126 = scmp.ne.s32.totalorder %s115, %s118
      %p127 = scmp.eq.s32.totalorder %s21, 1
      %p128 = por %p126, %p127
      %p129 = scmp.ne.s32.totalorder %s118, %s119
      %p130 = scmp.eq.s32.totalorder %s21, 0
      %p131 = por %p129, %p130
      %p132 = scmp.ne.s32.totalorder %s118, %s119
      %p133 = scmp.eq.s32.totalorder %s22, 1
      %p134 = por %p132, %p133
      %p136 = scmp.ne.s32.totalorder %s119, %s135
      %p137 = scmp.eq.s32.totalorder %s22, 0
      %p138 = por %p136, %p137
      %p139 = scmp.le.s32.totalorder 1, %s16
      %p140 = scmp.lt.s32.totalorder %s16, 3
      %p141 = pnand %p139, %p140
      %p142 = pneg %p141
      // Predicated region
      $region9: #{tpu_custom_call.1} parent=5 // pred_check
        _
      $region10: #{tpu_custom_call.1} parent=5 // pred_check_branch
        %144 = sbr.rel (%p141) target = $region12
      $region11: #{tpu_custom_call.1} parent=5 // pred_region
        %s145 = ssub.s32 %s16, 1
        // Predicated region
        $region13: #{tpu_custom_call.1} parent=11 // pred_check
          %p146 = pneg %p105
        $region14: #{tpu_custom_call.1} parent=11 // pred_check_branch
          %148 = sbr.rel (%p146) target = $region16
        $region15: #{tpu_custom_call.1} parent=11 // pred_region
          %s150 = ssub.s32 16, 16
          %151 = vsyncadd [#allocation6], %s150
          %s153 = sshll.u32 %s2, 4
          %s154 = int_to_ptr.vmem [resolvable:$true] %s153
          %156 = dma.vmem_to_smem %s154, 16, [#allocation7], [#allocation6]
        $region16: #{tpu_custom_call.1} parent=11 // pred_fallthru
          _
      $region12: #{tpu_custom_call.1} parent=5 // pred_fallthru
        _
      %p157 = scmp.lt.s32.totalorder %s16, 2
      // Predicated region
      $region17: #{tpu_custom_call.1} parent=5 // pred_check
        %p158 = pneg %p157
      $region18: #{tpu_custom_call.1} parent=5 // pred_check_branch
        %160 = sbr.rel (%p158) target = $region20
      $region19: #{tpu_custom_call.1} parent=5 // pred_region
        // Predicated region
        $region21: #{tpu_custom_call.1} parent=19 // pred_check
          %p161 = pneg %p50
        $region22: #{tpu_custom_call.1} parent=19 // pred_check_branch
          %163 = sbr.rel (%p161) target = $region24
        $region23: #{tpu_custom_call.1} parent=19 // pred_region
          %s164 = sand.u32 %s40, 1
          %s165 = scalar_lea.sflag [#allocation4], %s164
          %s166 = sand.u32 %s40, 1
          %s167 = smul.addr %s166, 16
          %s168 = scalar_lea.vmem [#allocation3], %s167
          %s169 = sadd.s32 %s23, %s24
          %s171 = ssub.s32 256, 256
          %172 = vsyncadd %s165, %s171
          %s173 = smul.addr %s169, 128
          %s174 = scalar_lea.hbm %s0, %s173
          %s175 = sshll.u32 %s168, 4
          %s176 = int_to_ptr.vmem [resolvable:$true] %s175
          %181 = dma.hbm_to_vmem [thread:$0]  %s174, 256, %s176, %s165, 256, 128, 8
        $region24: #{tpu_custom_call.1} parent=19 // pred_fallthru
          _
        // Predicated region
        $region25: #{tpu_custom_call.1} parent=19 // pred_check
          %p182 = pneg %p78
        $region26: #{tpu_custom_call.1} parent=19 // pred_check_branch
          %184 = sbr.rel (%p182) target = $region28
        $region27: #{tpu_custom_call.1} parent=19 // pred_region
          %s185 = sadd.s32 %s23, %s24
          %p186 = scmp.lt.s32.totalorder %s185, 1
          %s187 = scalar_select %p186, %s185, 1
          %s188 = scalar_lea.vmem %s1, %s187
          %s189 = sadd.s32 %s23, %s24
        $region28: #{tpu_custom_call.1} parent=19 // pred_fallthru
          _
      $region20: #{tpu_custom_call.1} parent=5 // pred_fallthru
        _
      %p190 = scmp.le.s32.totalorder 1, %s16
      %p191 = scmp.lt.s32.totalorder %s16, 3
      %p192 = pnand %p190, %p191
      %p193 = pneg %p192
      // Predicated region
      $region29: #{tpu_custom_call.1} parent=5 // pred_check
        _
      $region30: #{tpu_custom_call.1} parent=5 // pred_check_branch
        %195 = sbr.rel (%p192) target = $region32
      $region31: #{tpu_custom_call.1} parent=5 // pred_region
        %s196 = ssub.s32 %s16, 1
        %s197 = sand.u32 %s43, 1
        %s198 = scalar_lea.sflag [#allocation4], %s197
        %s199 = sand.u32 %s43, 1
        %s200 = smul.addr %s199, 16
        %s201 = scalar_lea.vmem [#allocation3], %s200
        // Predicated region
        $region33: #{tpu_custom_call.1} parent=31 // pred_check
          %p202 = pneg %p56
        $region34: #{tpu_custom_call.1} parent=31 // pred_check_branch
          %204 = sbr.rel (%p202) target = $region36
        $region35: #{tpu_custom_call.1} parent=31 // pred_region
          %205 = dma.done %s198, 256
        $region36: #{tpu_custom_call.1} parent=31 // pred_fallthru
          _
        // Predicated region
        $region37: #{tpu_custom_call.1} parent=31 // pred_check
          %p206 = pneg %p105
        $region38: #{tpu_custom_call.1} parent=31 // pred_check_branch
          %208 = sbr.rel (%p206) target = $region40
        $region39: #{tpu_custom_call.1} parent=31 // pred_region
          %209 = dma.done [#allocation6], 16
        $region40: #{tpu_custom_call.1} parent=31 // pred_fallthru
          _
        %210 = sfence
        %s211 = sand.u32 %s43, 1
        %s212 = scalar_lea.sflag [#allocation4], %s211
        %s213 = sand.u32 %s43, 1
        %s214 = smul.addr %s213, 16
        %s215 = scalar_lea.vmem [#allocation3], %s214
        %p216 = pneg %p56
        %p217 = pneg %p53
        %s218 = sadd.s32 %s25, %s26
        %p219 = scmp.lt.s32.totalorder %s218, 1
        %s220 = scalar_select %p219, %s218, 1
        %s221 = scalar_lea.vmem %s1, %s220
        %p222 = pneg %p84
        %p223 = pneg %p81
        %p224 = pneg %p105
        %p225 = pneg %p102
        %p226 = pneg %p131
        %p227 = pneg %p128
        %s228 = sand.u32 %s118, 1
        %s229 = scalar_lea.sflag [#allocation5], %s228
        %s230 = sand.u32 %s118, 1
        %s231 = smul.addr %s230, 8
        %s232 = scalar_lea.vmem [#allocation8], %s231
        %s233 = sadd.s32 %s25, %s26
        %s234 = sadd.s32 %s25, %s26
        %p235 = scmp.lt.s32.totalorder %s234, 1
        %s236 = scalar_select %p235, %s234, 1
        %s237 = scalar_lea.vmem %s1, %s236
        %s238 = sadd.s32 %s25, %s26
        %p239 = scmp.eq.s32.totalorder %s26, 0
        // Predicated region
        $region41: #{tpu_custom_call.1} parent=31 // pred_check
          %p240 = pneg %p239
        $region42: #{tpu_custom_call.1} parent=31 // pred_check_branch
          %242 = sbr.rel (%p240) target = $region44
        $region43: #{tpu_custom_call.1} parent=31 // pred_region
          %243 = vst [vmem:[#allocation2] sm:$0xff] 0.0
        $region44: #{tpu_custom_call.1} parent=31 // pred_fallthru
          _
        %v244 = vld [vmem:[%s201] sm:$0xff]
        %v245 = vld [vmem:[%s201 + $0x8] sm:$0xff]
        %v246 = vld [vmem:[%s237] sm:$0x1]
        %s247 = sld [smem:[#allocation7]]
        %s248 = sld [smem:[#allocation7 + $0x1]]
        %s249 = sld [smem:[#allocation7 + $0x2]]
        %vm250 = vcmp.ge.s32.totalorder %v246, 0
        %v251 = vsel %vm250, 1, 0
        %v252 = vcvt.s32.f32 %v251
        %vm253 = vcmp.lt.s32.totalorder %v246, 0
        %vm254 = vcmp.ne.s32.totalorder %v246, 2147483648
        %vm255 = vmand %vm253, %vm254
        %v256 = vsel %vm255, 1, 0
        %v257 = vcvt.s32.f32 %v256
        %v258 = vmax.f32 %v244, %v245
        %v259 = vrot.slane %v258, 4
        %v260 = vmax.f32 %v258, %v259
        %v261 = vrot.slane %v260, 2
        %v262 = vmax.f32 %v260, %v261
        %v263 = vrot.slane %v262, 1
        %v264 = vmax.f32 %v262, %v263
        %v265 = vsub.f32 %v244, %v264
        %v266 = vsub.f32 %v245, %v264
        %v267 = vmul.f32 %v265, 1.442695
        %v268 = vpow.pop %v267
        %v269 = vmul.f32 %v266, 1.442695
        %v270 = vpow.pop %v269
        %v271 = vadd.f32 %v268, %v270
        %v272 = vrot.slane %v271, 4
        %v273 = vadd.f32 %v271, %v272
        %v274 = vrot.slane %v273, 2
        %v275 = vadd.f32 %v273, %v274
        %v276 = vrot.slane %v275, 1
        %v277 = vadd.f32 %v275, %v276
        %v278 = vlog2.pop %v277
        %v279 = vmul.f32 %v278, 0.6931472
        %v280 = vadd.f32 %v264, %v279
        %v281 = vstv %s247
        %v282 = vmul.f32 %v281, %v280
        %v283 = vstv %s248
        %v284 = vadd.f32 %v282, %v283
        %v285 = vxor.u32 %v284, 2147483648
        %v286 = vmul.f32 %v285, 1.442695
        %v287 = vpow.pop %v286
        %v288 = vadd.f32 %v287, 1.0
        %v289 = vrcp.pop %v288
        %v290 = vmul.f32 1.0, %v289
        %v291 = vstv %s249
        %v292 = vsub.f32 %v280, %v291
        %v293 = vmul.f32 %v281, %v292
        %v294 = vadd.f32 %v293, %v283
        %v295 = vsub.f32 0.0, %v294
        %v296 = vxor.u32 %v295, 2147483648
        %v297 = vmul.f32 %v296, 1.442695
        %v298 = vpow.pop %v297
        %v299 = vadd.f32 %v298, 1.0
        %v300 = vrcp.pop %v299
        %v301 = vmul.f32 1.0, %v300
        %v302 = vlaneseq
        %v303 = vshrl.u32 %v302, 7
        %v304 = vadd.s32 %v303, 8
        %v305 = vlaneseq
        %v306 = vshrl.u32 %v305, 7
        %v307 = vsub.s32 0, %v306
        %v308 = vrot.slane %v246, %v307
        %vm309 = vcmp.eq.s32.totalorder %v303, %v308
        %vm310 = vcmp.eq.s32.totalorder %v304, %v308
        %v311 = vsel %vm309, %v244, 0.0
        %v312 = vsel %vm310, %v245, 0.0
        %v313 = vadd.f32 %v311, %v312
        %v314 = vrot.slane %v313, 4
        %v315 = vadd.f32 %v313, %v314
        %v316 = vrot.slane %v315, 2
        %v317 = vadd.f32 %v315, %v316
        %v318 = vrot.slane %v317, 1
        %v319 = vadd.f32 %v317, %v318
        %v320 = vsub.f32 %v280, %v319
        %v321 = vld [vmem:[#allocation2] sm:$0x1]
        %v322 = vmul.f32 %v290, %v252
        %v323 = vadd.f32 %v321, %v322
        %324 = vst [vmem:[#allocation2] sm:$0x1] %v323
        %v325 = vld [vmem:[#allocation2 + $0x1] sm:$0x1]
        %v326 = vmul.f32 %v301, %v257
        %v327 = vadd.f32 %v325, %v326
        %328 = vst [vmem:[#allocation2 + $0x1] sm:$0x1] %v327
        %v329 = vld [vmem:[#allocation2 + $0x2] sm:$0x1]
        %v330 = vmul.f32 %v320, %v252
        %v331 = vadd.f32 %v329, %v330
        %332 = vst [vmem:[#allocation2 + $0x2] sm:$0x1] %v331
        %v333 = vld [vmem:[#allocation2 + $0x3] sm:$0x1]
        %v334 = vadd.f32 %v333, %v252
        %335 = vst [vmem:[#allocation2 + $0x3] sm:$0x1] %v334
        // Predicated region
        $region45: #{tpu_custom_call.1} parent=31 // pred_check
          %p336 = pneg %p239
        $region46: #{tpu_custom_call.1} parent=31 // pred_check_branch
          %338 = sbr.rel (%p336) target = $region48
        $region47: #{tpu_custom_call.1} parent=31 // pred_region
          %v339 = vld [vmem:[#allocation2] sm:$0xff]
          %340 = vadd.xlane.f32.xlu0 %v339
          %v341 = vpop.xlane.xlu0 %340
          %342 = vst [vmem:[%s232] sm:$0xff] %v341
        $region48: #{tpu_custom_call.1} parent=31 // pred_fallthru
          _
        %s343 = sand.u32 %s118, 1
        %s344 = scalar_lea.sflag [#allocation5], %s343
        %s345 = sand.u32 %s118, 1
        %s346 = smul.addr %s345, 8
        %s347 = scalar_lea.vmem [#allocation8], %s346
        // Predicated region
        $region49: #{tpu_custom_call.1} parent=31 // pred_check
          %p348 = pneg %p128
        $region50: #{tpu_custom_call.1} parent=31 // pred_check_branch
          %350 = sbr.rel (%p348) target = $region52
        $region51: #{tpu_custom_call.1} parent=31 // pred_region
          %s352 = ssub.s32 128, 128
          %353 = vsyncadd %s344, %s352
          %s354 = smul.addr %s25, 128
          %s355 = scalar_lea.hbm %s3, %s354
          %s357 = sshll.u32 %s347, 4
          %s358 = int_to_ptr.vmem [resolvable:$true] %s357
          %360 = dma.vmem_to_hbm [thread:$0]  %s358, 128, %s355, %s344
        $region52: #{tpu_custom_call.1} parent=31 // pred_fallthru
          _
      $region32: #{tpu_custom_call.1} parent=5 // pred_fallthru
        _
      %p361 = scmp.le.s32.totalorder 2, %s16
      // Predicated region
      $region53: #{tpu_custom_call.1} parent=5 // pred_check
        %p362 = pneg %p361
      $region54: #{tpu_custom_call.1} parent=5 // pred_check_branch
        %364 = sbr.rel (%p362) target = $region56
      $region55: #{tpu_custom_call.1} parent=5 // pred_region
        %s365 = ssub.s32 %s16, 2
        // Predicated region
        $region57: #{tpu_custom_call.1} parent=55 // pred_check
          %p366 = pneg %p134
        $region58: #{tpu_custom_call.1} parent=55 // pred_check_branch
          %368 = sbr.rel (%p366) target = $region60
        $region59: #{tpu_custom_call.1} parent=55 // pred_region
          %s369 = sand.u32 %s119, 1
          %s370 = scalar_lea.sflag [#allocation5], %s369
          %s371 = sand.u32 %s119, 1
          %s372 = smul.addr %s371, 8
          %s373 = scalar_lea.vmem [#allocation8], %s372
          %374 = dma.done %s370, 128
        $region60: #{tpu_custom_call.1} parent=55 // pred_fallthru
          _
      $region56: #{tpu_custom_call.1} parent=5 // pred_fallthru
        _
    $region6: #{tpu_custom_call.1} parent=1 // loop_footer
      %s20 = sadd.s32 1, %s16
    $region7: #{tpu_custom_call.1} parent=1 // loop_footer_branch
      %15 = sbr.rel target = $region3
    $region8: #{tpu_custom_call.1} parent=1 // loop_exit
      _
    %375 = vsyncpa [#allocation4], 1
    %s376 = scalar_lea.sflag [#allocation4], 1
    %377 = vsyncpa %s376, 1
    %378 = vsyncpa [#allocation5], 1
    %s379 = scalar_lea.sflag [#allocation5], 1
    %380 = vsyncpa %s379, 1
    %381 = vsyncpa [#allocation6], 1
    %s382 = scalar_lea.sflag [#allocation6], 1
    %383 = vsyncpa %s382, 1

</llo_original>
